<compile_context>
chip_gen: v6e
topology: v6e:2x2x1
jax: 0.10.0
libtpu: 0.0.40
codegen_flags: <defaults>
</compile_context>

<pallas_src>
import functools
import math

import jax
import jax.numpy as jnp
from jax.experimental import pallas as pl
from jax.experimental.pallas import tpu as pltpu


def _garan_kernel(v_ref, qcd_ref, gb_ref, wvs_ref, bvs_ref, perm_ref,
                  bnsc_ref, bnsh_ref, out_ref, *, hw_valid, slope):
    """One grid step = one batch element, channels-first (d_o, HW_pad) layout.

    v_ref    : (d_v, HWp)   visual features, NCHW-flattened (lane-padded)
    qcd_ref  : (2, d_v)     row0 = (q @ w_kc)/temp, row1 = (q @ w_kd)/temp
    gb_ref   : (1, 1)       (q . b_kd)/temp  (diffuse-gate bias)
    wvs_ref  : (d_o, d_v)   w_vs 1x1-conv weight
    bvs_ref  : (d_o, 1)     b_vs
    perm_ref : (HWp, HWp)   spatial (H,W)->(W,H) permutation (output NCHW order)
    bnsc/bnsh: (d_o, 1)     folded BatchNorm scale / shift
    out_ref  : (d_o, HWp)
    """
    f32 = jnp.float32
    hw_pad = v_ref.shape[-1]

    v = v_ref[...].astype(f32)                                       # (d_v, HWp)

    # Single pass over v: collect logits (row 0) and diffuse logits (row 1).
    logits = jnp.dot(qcd_ref[...], v, preferred_element_type=f32)    # (2, HWp)
    cl = logits[0:1, :]
    gl = logits[1:2, :]

    if hw_valid < hw_pad:                       # static: mask lane padding
        lane = jax.lax.broadcasted_iota(jnp.int32, cl.shape, 1)
        cl = jnp.where(lane < hw_valid, cl, -1e30)

    # Collect attention (softmax over all spatial positions).  Normalization is
    # postponed to the pooled d_v-vector, so the divide is scalar-sized and
    # exact (pl.reciprocal(approx=True) buys nothing after this refactor).
    m = jnp.max(cl, axis=-1, keepdims=True)
    e = jnp.exp(cl - m)                                               # (1, HWp)
    denom = jnp.sum(e, axis=-1, keepdims=True)                        # (1, 1)

    # Softmax weights sum to 1 => attn = w_vs @ (v @ a) + b_vs exactly.
    # Pool v on the VPU (multiply) + XLU (lane reduce), then one tiny matmul.
    va = jnp.sum(v * e, axis=-1, keepdims=True) / denom               # (d_v, 1)
    attn = jnp.dot(wvs_ref[...], va, preferred_element_type=f32) + bvs_ref[...]

    # Diffuse gate: permute the 1xHW logit row into the output's NCHW spatial
    # order (PyTorch view/permute/view quirk) with one tiny MXU matmul.
    gate_logit = jnp.dot(gl, perm_ref[...], preferred_element_type=f32) + gb_ref[...]
    gate = jax.nn.sigmoid(gate_logit)                                 # (1, HWp)

    # TODO(synk): dropout_c / dropout_d / outer dropout are identity (eval mode).
    out = attn * gate + v                       # outer product + residual (d_o == d_v)
    y = out * bnsc_ref[...] + bnsh_ref[...]     # BatchNorm2d (eval, folded)
    y = jnp.where(y >= 0, y, slope * y)         # LeakyReLU(0.1)
    out_ref[...] = y.astype(out_ref.dtype)


@functools.partial(jax.jit, static_argnames=("n_head",))
def garan_attention_forward(l_feats, l_pooler, v, p, n_head=1):
    assert n_head == 1, "kernel implements the module's single-head configuration"
    B, d_q, T = l_feats.shape
    _, d_v, H, W = v.shape
    d_o = d_v
    HW = H * W
    HW_pad = max(128, ((HW + 127) // 128) * 128)        # lane-dense last dim
    temperature = float(math.sqrt(d_o // n_head))
    eps = 1e-5
    f32 = jnp.float32
    out_dtype = v.dtype          # bf16 in/out halves HBM traffic; compute stays f32

    # ---------- hoisted XLA pre-compute (tiny tensors only; never touches v) ----------
    with jax.default_matmul_precision("float32"):
        lf = l_feats.astype(f32)
        lp = l_pooler.astype(f32)
        fused = jnp.concatenate(
            [lf, jnp.broadcast_to(lp[:, :, None], (B, d_q, T))], axis=2)
        fused = jnp.transpose(fused, (0, 2, 1))                        # (B, 2T, d_q)
        lin = jnp.einsum("btc,dc->btd", fused, p["w_lin"]) + p["b_lin"]
        l_fusion = jnp.mean(lin, axis=1)                               # (B, d_q)
        q = jnp.einsum("bc,dc->bd", l_fusion, p["w_qs"]) + p["b_qs"]   # (B, d_o)

        # Fold w_kc / w_kd through the query: q^T(Wx + b) = (q^T W)x + q.b
        qkc = jnp.einsum("bd,dc->bc", q, p["w_kc"]) / temperature      # (B, d_v)
        qkd = jnp.einsum("bd,dc->bc", q, p["w_kd"]) / temperature      # (B, d_v)
        gb = jnp.einsum("bd,d->b", q, p["b_kd"]) / temperature         # (B,)
        # (q . b_kc is a constant softmax-logit shift -> dropped.)
    qcd = jnp.stack([qkc, qkd], axis=1)                                # (B, 2, d_v)
    gb = gb.reshape(B, 1, 1)

    # Spatial permutation from PyTorch's view(B,n,H,W,dh).permute(0,1,4,3,2).view:
    # output flat index t takes the gate computed at source s = (t % H)*W + t // H.
    # Expressed as a 0/1 matrix so the kernel applies it with one tiny matmul.
    # TODO(synk): for production HW (>= 2-4K) replace this O(HW^2) matrix with an
    # in-kernel (H,W)->(W,H) relayout of the 1xHW logit row.
    t_idx = jnp.arange(HW, dtype=jnp.int32)
    s_idx = (t_idx % H) * W + (t_idx // H)
    perm = jnp.zeros((HW_pad, HW_pad), f32).at[s_idx, t_idx].set(1.0)

    # Small constants: w_vs / b_vs and folded BatchNorm (eval).
    w_vs = p["w_vs"].astype(f32)                                       # (d_o, d_v)
    b_vs = p["b_vs"].astype(f32)[:, None]                              # (d_o, 1)
    bn_scale = (p["bn_gamma"] * jax.lax.rsqrt(p["bn_var"] + eps))[:, None]
    bn_shift = p["bn_beta"][:, None] - p["bn_mean"][:, None] * bn_scale

    # v stays in its native NCHW-flattened, channels-first layout (free reshape);
    # pad the lane dim to a multiple of 128 when H*W is not.
    v_cf = v.reshape(B, d_v, HW)
    if HW_pad != HW:
        v_cf = jnp.pad(v_cf, ((0, 0), (0, 0), (0, HW_pad - HW)))

    kernel = functools.partial(_garan_kernel, hw_valid=HW, slope=0.1)

    # Explicit scoped-VMEM budget: double-buffered v/out blocks + constants +
    # in-kernel f32 temporaries, clamped to a range safe on v5e/v6e/v7x.
    est = (2 * (d_v * HW_pad * v_cf.dtype.itemsize
                + d_o * HW_pad * jnp.dtype(out_dtype).itemsize)
           + HW_pad * HW_pad * 4 + 8 * d_v * HW_pad * 4 + (1 << 20))
    vmem_limit = int(min(96 * 2**20, max(32 * 2**20, 2 * est)))

    y_cf = pl.pallas_call(
        kernel,
        out_shape=jax.ShapeDtypeStruct((B, d_o, HW_pad), out_dtype),
        grid=(B,),
        in_specs=[
            pl.BlockSpec((None, d_v, HW_pad), lambda b: (b, 0, 0)),   # v (read once)
            pl.BlockSpec((None, 2, d_v), lambda b: (b, 0, 0)),        # folded queries
            pl.BlockSpec((None, 1, 1), lambda b: (b, 0, 0)),          # gate bias
            pl.BlockSpec((d_o, d_v), lambda b: (0, 0)),               # w_vs
            pl.BlockSpec((d_o, 1), lambda b: (0, 0)),                 # b_vs
            pl.BlockSpec((HW_pad, HW_pad), lambda b: (0, 0)),         # spatial perm
            pl.BlockSpec((d_o, 1), lambda b: (0, 0)),                 # BN scale
            pl.BlockSpec((d_o, 1), lambda b: (0, 0)),                 # BN shift
        ],
        out_specs=pl.BlockSpec((None, d_o, HW_pad), lambda b: (b, 0, 0)),
        compiler_params=pltpu.CompilerParams(
            dimension_semantics=("parallel",),
            vmem_limit_bytes=vmem_limit),
    )(v_cf, qcd, gb, w_vs, b_vs, perm, bn_scale, bn_shift)

    # TODO(synk): with very small B (e.g. B=2 on v7x) each core runs a single grid
    # step so there is no grid-level pipelining; if needed, add an HW-tile axis with
    # an online-softmax accumulator and a second epilogue pass over VMEM-resident v.
    if HW_pad != HW:
        y_cf = y_cf[:, :, :HW]
    return y_cf.reshape(B, d_o, H, W)            # free reshape -- already NCHW


def reference_forward(l_feats, l_pooler, v, p, n_head=1):
    """Plain-JAX mirror of the PyTorch forward (eval mode), for checking."""
    with jax.default_matmul_precision("float32"):
        B, d_q, T = l_feats.shape
        _, d_v, H, W = v.shape
        d_o = d_v
        HW = H * W

        fused = jnp.concatenate(
            [l_feats, jnp.broadcast_to(l_pooler[:, :, None], (B, d_q, T))], axis=2)
        fused = jnp.transpose(fused, (0, 2, 1))
        lin = fused @ p["w_lin"].T + p["b_lin"]
        l_fusion = jnp.mean(lin, axis=1)
        q = l_fusion @ p["w_qs"].T + p["b_qs"]

        def conv1x1(x, w, b):
            return jnp.einsum("bchw,oc->bohw", x, w) + b[None, :, None, None]

        kc = conv1x1(v, p["w_kc"], p["b_kc"]).reshape(B, d_o, HW).transpose(0, 2, 1)
        kd = conv1x1(v, p["w_kd"], p["b_kd"]).reshape(B, d_o, HW).transpose(0, 2, 1)
        vv = conv1x1(v, p["w_vs"], p["b_vs"]).reshape(B, d_o, HW).transpose(0, 2, 1)

        temp = math.sqrt(d_o // n_head)
        qb = q[:, None, :]
        attn_col = jax.nn.softmax(jnp.einsum("bqd,bkd->bqk", qb, kc) / temp, axis=2)
        attn = jnp.einsum("bqk,bkd->bqd", attn_col, vv)
        attn_dif = jax.nn.sigmoid(jnp.einsum("bkd,bqd->bkq", kd, qb) / temp)
        out = jnp.einsum("bkq,bqd->bkd", attn_dif, attn)

        out5 = out.reshape(B, n_head, H, W, d_o // n_head)
        out_nchw = jnp.transpose(out5, (0, 1, 4, 3, 2)).reshape(B, d_o, H, W)
        out_nchw = out_nchw + v
        y = (out_nchw - p["bn_mean"][None, :, None, None]) \
            * jax.lax.rsqrt(p["bn_var"] + 1e-5)[None, :, None, None] \
            * p["bn_gamma"][None, :, None, None] + p["bn_beta"][None, :, None, None]
        return jnp.where(y >= 0, y, 0.1 * y)


def init_params(key, d_q, d_v, n_head=1):
    d_o = d_v
    ks = jax.random.split(key, 10)
    std_q = math.sqrt(2.0 / (d_q + d_o))
    std_v = math.sqrt(2.0 / (d_v + d_o // n_head))
    f32 = jnp.float32
    return {
        "w_lin": 0.1 * jax.random.normal(ks[0], (d_q, d_q), f32),
        "b_lin": 0.1 * jax.random.normal(ks[1], (d_q,), f32),
        "w_qs": std_q * jax.random.normal(ks[2], (d_o, d_q), f32),
        "b_qs": 0.1 * jax.random.normal(ks[3], (d_o,), f32),
        "w_kc": std_v * jax.random.normal(ks[4], (d_o, d_v), f32),
        "b_kc": 0.1 * jax.random.normal(ks[5], (d_o,), f32),
        "w_kd": std_v * jax.random.normal(ks[6], (d_o, d_v), f32),
        "b_kd": 0.1 * jax.random.normal(ks[7], (d_o,), f32),
        "w_vs": std_v * jax.random.normal(ks[8], (d_o, d_v), f32),
        "b_vs": 0.1 * jax.random.normal(ks[9], (d_o,), f32),
        "bn_gamma": jnp.ones((d_o,), f32),
        "bn_beta": jnp.zeros((d_o,), f32),
        "bn_mean": jnp.zeros((d_o,), f32),
        "bn_var": jnp.ones((d_o,), f32),
    }


if __name__ == "__main__":
    def run_case(key, B, d_q, T, d_v, H, W, dtype=jnp.float32, tol=3e-4):
        k1, k2, k3, k4 = jax.random.split(key, 4)
        l_feats = jax.random.normal(k1, (B, d_q, T), jnp.float32)
        l_pooler = jax.random.normal(k2, (B, d_q), jnp.float32)
        v = jax.random.normal(k3, (B, d_v, H, W), jnp.float32).astype(dtype)
        params = init_params(k4, d_q, d_v)

        out = garan_attention_forward(l_feats, l_pooler, v, params)
        out = jax.block_until_ready(out)
        assert out.shape == (B, d_v, H, W), out.shape
        assert out.dtype == dtype, out.dtype

        ref = reference_forward(l_feats, l_pooler, v.astype(jnp.float32), params)
        err = float(jnp.max(jnp.abs(out.astype(jnp.float32) - ref)))
        assert err < tol, f"max abs error {err} (tol {tol})"

    key = jax.random.PRNGKey(0)
    k_a, k_b, k_c, k_d = jax.random.split(key, 4)
    # primary case (f32, H == W)
    run_case(k_a, B=2, d_q=32, T=8, d_v=32, H=16, W=16, dtype=jnp.float32, tol=3e-4)
    # H != W: exercises the view/permute/view spatial quirk
    run_case(k_b, B=4, d_q=32, T=8, d_v=32, H=8, W=16, dtype=jnp.float32, tol=3e-4)
    # H*W not a multiple of 128: exercises lane padding + softmax masking
    run_case(k_c, B=2, d_q=32, T=8, d_v=32, H=13, W=13, dtype=jnp.float32, tol=3e-4)
    # bf16 storage for the dominant streams (v in / y out), f32 compute in-kernel
    run_case(k_d, B=2, d_q=32, T=8, d_v=32, H=16, W=16, dtype=jnp.bfloat16, tol=5e-2)
    print("KERNEL_OK")
</pallas_src>

<mosaic_0001>
module attributes {stable_mosaic.version = 11 : i64} {
  func.func @_garan_kernel(%arg0: i32, %arg1: memref<1x32x256xf32, #tpu.memory_space<vmem>>, %arg2: memref<1x2x32xf32, #tpu.memory_space<vmem>>, %arg3: memref<1x1x1xf32, #tpu.memory_space<vmem>>, %arg4: memref<32x32xf32, #tpu.memory_space<vmem>>, %arg5: memref<32x1xf32, #tpu.memory_space<vmem>>, %arg6: memref<256x256xf32, #tpu.memory_space<vmem>>, %arg7: memref<32x1xf32, #tpu.memory_space<vmem>>, %arg8: memref<32x1xf32, #tpu.memory_space<vmem>>, %arg9: memref<1x32x256xf32, #tpu.memory_space<vmem>>) attributes {dimension_semantics = [#tpu.dimension_semantics<parallel>], iteration_bounds = array<i64: 2>, scalar_prefetch = 0 : i64, scratch_operands = 0 : i64, tpu.core_type = #tpu.core_type<tc>, window_params = [{transform_indices = @transform_0, window_bounds = array<i64: 1, 32, 256>}, {transform_indices = @transform_1, window_bounds = array<i64: 1, 2, 32>}, {transform_indices = @transform_2, window_bounds = array<i64: 1, 1, 1>}, {pipeline_mode = #tpu.pipeline_mode<synchronous>, transform_indices = @transform_3, window_bounds = array<i64: 32, 32>}, {pipeline_mode = #tpu.pipeline_mode<synchronous>, transform_indices = @transform_4, window_bounds = array<i64: 32, 1>}, {pipeline_mode = #tpu.pipeline_mode<synchronous>, transform_indices = @transform_5, window_bounds = array<i64: 256, 256>}, {pipeline_mode = #tpu.pipeline_mode<synchronous>, transform_indices = @transform_6, window_bounds = array<i64: 32, 1>}, {pipeline_mode = #tpu.pipeline_mode<synchronous>, transform_indices = @transform_7, window_bounds = array<i64: 32, 1>}, {transform_indices = @transform_8, window_bounds = array<i64: 1, 32, 256>}]} {
    %c0 = arith.constant 0 : index
    %c0_0 = arith.constant 0 : index
    %c0_1 = arith.constant 0 : index
    %0 = vector.load %arg1[%c0, %c0_0, %c0_1] : memref<1x32x256xf32, #tpu.memory_space<vmem>>, vector<1x32x256xf32>
    %1 = vector.shape_cast %0 : vector<1x32x256xf32> to vector<32x256xf32>
    %c0_2 = arith.constant 0 : index
    %c0_3 = arith.constant 0 : index
    %c0_4 = arith.constant 0 : index
    %2 = vector.load %arg2[%c0_2, %c0_3, %c0_4] : memref<1x2x32xf32, #tpu.memory_space<vmem>>, vector<1x2x32xf32>
    %3 = vector.shape_cast %2 : vector<1x2x32xf32> to vector<2x32xf32>
    %cst = arith.constant dense<0.000000e+00> : vector<2x256xf32>
    %4 = tpu.matmul %3, %1, %cst {dimension_numbers = #tpu.dot_dimension_numbers<[1], [0], [0], [1], [0, 0, 1, 1], [], []>} : vector<2x32xf32>, vector<32x256xf32>, vector<2x256xf32> -> vector<2x256xf32>
    %5 = vector.extract_strided_slice %4 {offsets = [0, 0], sizes = [1, 256], strides = [1, 1]} : vector<2x256xf32> to vector<1x256xf32>
    %6 = vector.extract_strided_slice %4 {offsets = [1, 0], sizes = [1, 256], strides = [1, 1]} : vector<2x256xf32> to vector<1x256xf32>
    %cst_5 = arith.constant dense<0xFF800000> : vector<1xf32>
    %7 = vector.multi_reduction <maximumf>, %5, %cst_5 [1] : vector<1x256xf32> to vector<1xf32>
    %8 = vector.shape_cast %7 : vector<1xf32> to vector<1x1xf32>
    %9 = vector.broadcast %8 : vector<1x1xf32> to vector<1x256xf32>
    %10 = arith.subf %5, %9 : vector<1x256xf32>
    %11 = math.exp %10 : vector<1x256xf32>
    %cst_6 = arith.constant dense<0.000000e+00> : vector<1xf32>
    %12 = vector.multi_reduction <add>, %11, %cst_6 [1] : vector<1x256xf32> to vector<1xf32>
    %13 = vector.shape_cast %12 : vector<1xf32> to vector<1x1xf32>
    %14 = vector.broadcast %11 : vector<1x256xf32> to vector<32x256xf32>
    %15 = arith.mulf %1, %14 : vector<32x256xf32>
    %cst_7 = arith.constant dense<0.000000e+00> : vector<32xf32>
    %16 = vector.multi_reduction <add>, %15, %cst_7 [1] : vector<32x256xf32> to vector<32xf32>
    %17 = vector.shape_cast %16 : vector<32xf32> to vector<32x1xf32>
    %18 = vector.broadcast %13 : vector<1x1xf32> to vector<32x1xf32>
    %19 = arith.divf %17, %18 : vector<32x1xf32>
    %c0_8 = arith.constant 0 : index
    %c0_9 = arith.constant 0 : index
    %20 = vector.load %arg4[%c0_8, %c0_9] : memref<32x32xf32, #tpu.memory_space<vmem>>, vector<32x32xf32>
    %cst_10 = arith.constant dense<0.000000e+00> : vector<32x1xf32>
    %21 = tpu.matmul %20, %19, %cst_10 {dimension_numbers = #tpu.dot_dimension_numbers<[1], [0], [0], [1], [0, 0, 1, 1], [], []>} : vector<32x32xf32>, vector<32x1xf32>, vector<32x1xf32> -> vector<32x1xf32>
    %c0_11 = arith.constant 0 : index
    %c0_12 = arith.constant 0 : index
    %22 = vector.load %arg5[%c0_11, %c0_12] : memref<32x1xf32, #tpu.memory_space<vmem>>, vector<32x1xf32>
    %23 = arith.addf %21, %22 : vector<32x1xf32>
    %c0_13 = arith.constant 0 : index
    %c0_14 = arith.constant 0 : index
    %24 = vector.load %arg6[%c0_13, %c0_14] : memref<256x256xf32, #tpu.memory_space<vmem>>, vector<256x256xf32>
    %cst_15 = arith.constant dense<0.000000e+00> : vector<1x256xf32>
    %25 = tpu.matmul %6, %24, %cst_15 {dimension_numbers = #tpu.dot_dimension_numbers<[1], [0], [0], [1], [0, 0, 1, 1], [], []>} : vector<1x256xf32>, vector<256x256xf32>, vector<1x256xf32> -> vector<1x256xf32>
    %c0_16 = arith.constant 0 : index
    %c0_17 = arith.constant 0 : index
    %c0_18 = arith.constant 0 : index
    %26 = vector.load %arg3[%c0_16, %c0_17, %c0_18] : memref<1x1x1xf32, #tpu.memory_space<vmem>>, vector<1x1x1xf32>
    %27 = vector.shape_cast %26 : vector<1x1x1xf32> to vector<1x1xf32>
    %28 = vector.broadcast %27 : vector<1x1xf32> to vector<1x256xf32>
    %29 = arith.addf %25, %28 : vector<1x256xf32>
    %30 = arith.negf %29 : vector<1x256xf32>
    %31 = math.exp %30 : vector<1x256xf32>
    %cst_19 = arith.constant 1.000000e+00 : f32
    %32 = vector.broadcast %cst_19 : f32 to vector<1x256xf32>
    %33 = arith.addf %32, %31 : vector<1x256xf32>
    %34 = arith.divf %32, %33 : vector<1x256xf32>
    %35 = vector.broadcast %23 : vector<32x1xf32> to vector<32x256xf32>
    %36 = vector.broadcast %34 : vector<1x256xf32> to vector<32x256xf32>
    %37 = arith.mulf %35, %36 : vector<32x256xf32>
    %38 = arith.addf %37, %1 : vector<32x256xf32>
    %c0_20 = arith.constant 0 : index
    %c0_21 = arith.constant 0 : index
    %39 = vector.load %arg7[%c0_20, %c0_21] : memref<32x1xf32, #tpu.memory_space<vmem>>, vector<32x1xf32>
    %40 = vector.broadcast %39 : vector<32x1xf32> to vector<32x256xf32>
    %41 = arith.mulf %38, %40 : vector<32x256xf32>
    %c0_22 = arith.constant 0 : index
    %c0_23 = arith.constant 0 : index
    %42 = vector.load %arg8[%c0_22, %c0_23] : memref<32x1xf32, #tpu.memory_space<vmem>>, vector<32x1xf32>
    %43 = vector.broadcast %42 : vector<32x1xf32> to vector<32x256xf32>
    %44 = arith.addf %41, %43 : vector<32x256xf32>
    %cst_24 = arith.constant 0.000000e+00 : f32
    %45 = vector.broadcast %cst_24 : f32 to vector<32x256xf32>
    %46 = arith.cmpf oge, %44, %45 : vector<32x256xf32>
    %cst_25 = arith.constant 1.000000e-01 : f32
    %47 = vector.broadcast %cst_25 : f32 to vector<32x256xf32>
    %48 = arith.mulf %47, %44 : vector<32x256xf32>
    %49 = arith.select %46, %44, %48 : vector<32x256xi1>, vector<32x256xf32>
    %c0_26 = arith.constant 0 : index
    %c0_27 = arith.constant 0 : index
    %c0_28 = arith.constant 0 : index
    %50 = vector.load %arg9[%c0_26, %c0_27, %c0_28] : memref<1x32x256xf32, #tpu.memory_space<vmem>>, vector<1x32x256xf32>
    %51 = vector.shape_cast %50 : vector<1x32x256xf32> to vector<32x256xf32>
    %52 = vector.shape_cast %49 : vector<32x256xf32> to vector<1x32x256xf32>
    tpu.vector_store %arg9[%c0_26, %c0_27, %c0_28], %52 {strides = array<i32>} : memref<1x32x256xf32, #tpu.memory_space<vmem>>, vector<1x32x256xf32>,
    return
  }
  func.func @transform_0(%arg0: i32) -> (i32, i32, i32) {
    %c0_i32 = arith.constant 0 : i32
    %c0_i32_0 = arith.constant 0 : i32
    %c0_i32_1 = arith.constant 0 : i32
    return %arg0, %c0_i32, %c0_i32_0 : i32, i32, i32
  }
  func.func @transform_1(%arg0: i32) -> (i32, i32, i32) {
    %c0_i32 = arith.constant 0 : i32
    %c0_i32_0 = arith.constant 0 : i32
    %c0_i32_1 = arith.constant 0 : i32
    return %arg0, %c0_i32, %c0_i32_0 : i32, i32, i32
  }
  func.func @transform_2(%arg0: i32) -> (i32, i32, i32) {
    %c0_i32 = arith.constant 0 : i32
    %c0_i32_0 = arith.constant 0 : i32
    %c0_i32_1 = arith.constant 0 : i32
    return %arg0, %c0_i32, %c0_i32_0 : i32, i32, i32
  }
  func.func @transform_3(%arg0: i32) -> (i32, i32) {
    %c0_i32 = arith.constant 0 : i32
    %c0_i32_0 = arith.constant 0 : i32
    %c0_i32_1 = arith.constant 0 : i32
    return %c0_i32, %c0_i32_0 : i32, i32
  }
  func.func @transform_4(%arg0: i32) -> (i32, i32) {
    %c0_i32 = arith.constant 0 : i32
    %c0_i32_0 = arith.constant 0 : i32
    %c0_i32_1 = arith.constant 0 : i32
    return %c0_i32, %c0_i32_0 : i32, i32
  }
  func.func @transform_5(%arg0: i32) -> (i32, i32) {
    %c0_i32 = arith.constant 0 : i32
    %c0_i32_0 = arith.constant 0 : i32
    %c0_i32_1 = arith.constant 0 : i32
    return %c0_i32, %c0_i32_0 : i32, i32
  }
  func.func @transform_6(%arg0: i32) -> (i32, i32) {
    %c0_i32 = arith.constant 0 : i32
    %c0_i32_0 = arith.constant 0 : i32
    %c0_i32_1 = arith.constant 0 : i32
    return %c0_i32, %c0_i32_0 : i32, i32
  }
  func.func @transform_7(%arg0: i32) -> (i32, i32) {
    %c0_i32 = arith.constant 0 : i32
    %c0_i32_0 = arith.constant 0 : i32
    %c0_i32_1 = arith.constant 0 : i32
    return %c0_i32, %c0_i32_0 : i32, i32
  }
  func.func @transform_8(%arg0: i32) -> (i32, i32, i32) {
    %c0_i32 = arith.constant 0 : i32
    %c0_i32_0 = arith.constant 0 : i32
    %c0_i32_1 = arith.constant 0 : i32
    return %arg0, %c0_i32, %c0_i32_0 : i32, i32, i32
  }
}

</mosaic_0001>

<llo_original>
// kernel: garan_attention_forward.1
$region0: #{garan_attention_forward.1}
  #allocation0 [shape = 'u32[]', space=smem, size = 0x4, offset = 0x4, fixed_abs, tag = 'smem constant byte address 0x4 - core index']
  #allocation1 [shape = 'u32[144,128]{1,0:T(1,128)}', space=vmem, size = 0x12000, scoped, tag = 'internal scratch']
  %s0 = inlined_call_operand.vmem [shape: f32[2,32,256], index: 0, kind: input, shape index: {}]
  %s1 = inlined_call_operand.vmem [shape: f32[2,2,32], index: 1, kind: input, shape index: {}]
  %s2 = inlined_call_operand.vmem [shape: f32[2,1,1], index: 2, kind: input, shape index: {}]
  %s3 = inlined_call_operand.vmem [shape: f32[32,32], index: 3, kind: input, shape index: {}]
  %s4 = inlined_call_operand.vmem [shape: f32[32,1], index: 4, kind: input, shape index: {}]
  %s5 = inlined_call_operand.vmem [shape: f32[256,256], index: 5, kind: input, shape index: {}]
  %s6 = inlined_call_operand.vmem [shape: f32[32,1], index: 6, kind: input, shape index: {}]
  %s7 = inlined_call_operand.vmem [shape: f32[32,1], index: 7, kind: input, shape index: {}]
  %s8 = inlined_call_operand.vmem [shape: f32[2,32,256], index: 8, kind: output, shape index: {}]
  %s9 = sld [smem:[#allocation0]]
  $region65: #{garan_attention_forward.1} parent=0
    _
  %s11 = ssub.s32 1, %s9
  %s12 = scalar_select 0, %s11, %s9
  loop: start=0, step=1, limit=4
  $region2: #{garan_attention_forward.1} parent=0 // loop_pre_header
    _
  $region3: #{garan_attention_forward.1} parent=0 // loop_header
    %s14 = sphi 0, %s18
    %p15 = scmp.ge.s32.totalorder %s14, 4
    %s24 = sphi 0, %s26
    %s27 = sphi 0, %s24
    %s28 = sphi 0, %s27
    %s44 = sphi 0, %s28
    %s50 = sphi 0, %s52
    %s53 = sphi 0, %s50
    %s54 = sphi 0, %s53
    %s70 = sphi 0, %s54
    %s76 = sphi 0, %s78
    %s79 = sphi 0, %s76
    %s80 = sphi 0, %s79
    %s96 = sphi 0, %s80
    %s100 = sphi 0, %s100
    %s102 = sphi 0, %s100
    %s103 = sphi 0, %s102
    %s117 = sphi 0, %s103
    %s121 = sphi 0, %s121
    %s123 = sphi 0, %s121
    %s124 = sphi 0, %s123
    %s138 = sphi 0, %s124
    %s142 = sphi 0, %s142
    %s144 = sphi 0, %s142
    %s145 = sphi 0, %s144
    %s159 = sphi 0, %s145
    %s163 = sphi 0, %s163
    %s165 = sphi 0, %s163
    %s166 = sphi 0, %s165
    %s180 = sphi 0, %s166
    %s184 = sphi 0, %s184
    %s186 = sphi 0, %s184
    %s187 = sphi 0, %s186
    %s201 = sphi 0, %s187
    %s207 = sphi 0, %s209
    %s210 = sphi 0, %s207
    %s211 = sphi 0, %s210
    %s227 = sphi 0, %s211
  $region4: #{garan_attention_forward.1} parent=0 // loop_header_branch
    %17 = sbr.rel (%p15) target = $region8
  $region5: #{garan_attention_forward.1} parent=0 // loop_body
    %s19 = ssub.s32 %s14, 1
    %s20 = ssub.s32 %s14, 2
    %s21 = sadd.s32 %s14, 1
    %s22 = ssub.s32 %s14, %s21
    %p23 = scmp.eq.s32.totalorder %s22, 0
    %s25 = sadd.s32 %s24, 1
    %s26 = scalar_select %p23, %s24, %s25
    %p29 = pneg %p23
    %p30 = scmp.eq.s32.totalorder %s14, 1
    %p31 = por %p29, %p30
    %p32 = scmp.ne.s32.totalorder %s24, %s27
    %p33 = scmp.eq.s32.totalorder %s14, 0
    %p34 = por %p32, %p33
    %p35 = scmp.ne.s32.totalorder %s24, %s27
    %p36 = scmp.eq.s32.totalorder %s19, 1
    %p37 = por %p35, %p36
    %p38 = scmp.ne.s32.totalorder %s27, %s28
    %p39 = scmp.eq.s32.totalorder %s19, 0
    %p40 = por %p38, %p39
    %p41 = scmp.ne.s32.totalorder %s27, %s28
    %p42 = scmp.eq.s32.totalorder %s20, 1
    %p43 = por %p41, %p42
    %p45 = scmp.ne.s32.totalorder %s28, %s44
    %p46 = scmp.eq.s32.totalorder %s20, 0
    %p47 = por %p45, %p46
    %s48 = ssub.s32 %s14, %s21
    %p49 = scmp.eq.s32.totalorder %s48, 0
    %s51 = sadd.s32 %s50, 1
    %s52 = scalar_select %p49, %s50, %s51
    %p55 = pneg %p49
    %p56 = scmp.eq.s32.totalorder %s14, 1
    %p57 = por %p55, %p56
    %p58 = scmp.ne.s32.totalorder %s50, %s53
    %p59 = scmp.eq.s32.totalorder %s14, 0
    %p60 = por %p58, %p59
    %p61 = scmp.ne.s32.totalorder %s50, %s53
    %p62 = scmp.eq.s32.totalorder %s19, 1
    %p63 = por %p61, %p62
    %p64 = scmp.ne.s32.totalorder %s53, %s54
    %p65 = scmp.eq.s32.totalorder %s19, 0
    %p66 = por %p64, %p65
    %p67 = scmp.ne.s32.totalorder %s53, %s54
    %p68 = scmp.eq.s32.totalorder %s20, 1
    %p69 = por %p67, %p68
    %p71 = scmp.ne.s32.totalorder %s54, %s70
    %p72 = scmp.eq.s32.totalorder %s20, 0
    %p73 = por %p71, %p72
    %s74 = ssub.s32 %s14, %s21
    %p75 = scmp.eq.s32.totalorder %s74, 0
    %s77 = sadd.s32 %s76, 1
    %s78 = scalar_select %p75, %s76, %s77
    %p81 = pneg %p75
    %p82 = scmp.eq.s32.totalorder %s14, 1
    %p83 = por %p81, %p82
    %p84 = scmp.ne.s32.totalorder %s76, %s79
    %p85 = scmp.eq.s32.totalorder %s14, 0
    %p86 = por %p84, %p85
    %p87 = scmp.ne.s32.totalorder %s76, %s79
    %p88 = scmp.eq.s32.totalorder %s19, 1
    %p89 = por %p87, %p88
    %p90 = scmp.ne.s32.totalorder %s79, %s80
    %p91 = scmp.eq.s32.totalorder %s19, 0
    %p92 = por %p90, %p91
    %p93 = scmp.ne.s32.totalorder %s79, %s80
    %p94 = scmp.eq.s32.totalorder %s20, 1
    %p95 = por %p93, %p94
    %p97 = scmp.ne.s32.totalorder %s80, %s96
    %p98 = scmp.eq.s32.totalorder %s20, 0
    %p99 = por %p97, %p98
    %s101 = sadd.s32 %s100, 1
    %p104 = scmp.eq.s32.totalorder %s14, 1
    %p105 = scmp.ne.s32.totalorder %s100, %s102
    %p106 = scmp.eq.s32.totalorder %s14, 0
    %p107 = por %p105, %p106
    %p108 = scmp.ne.s32.totalorder %s100, %s102
    %p109 = scmp.eq.s32.totalorder %s19, 1
    %p110 = por %p108, %p109
    %p111 = scmp.ne.s32.totalorder %s102, %s103
    %p112 = scmp.eq.s32.totalorder %s19, 0
    %p113 = por %p111, %p112
    %p114 = scmp.ne.s32.totalorder %s102, %s103
    %p115 = scmp.eq.s32.totalorder %s20, 1
    %p116 = por %p114, %p115
    %p118 = scmp.ne.s32.totalorder %s103, %s117
    %p119 = scmp.eq.s32.totalorder %s20, 0
    %p120 = por %p118, %p119
    %s122 = sadd.s32 %s121, 1
    %p125 = scmp.eq.s32.totalorder %s14, 1
    %p126 = scmp.ne.s32.totalorder %s121, %s123
    %p127 = scmp.eq.s32.totalorder %s14, 0
    %p128 = por %p126, %p127
    %p129 = scmp.ne.s32.totalorder %s121, %s123
    %p130 = scmp.eq.s32.totalorder %s19, 1
    %p131 = por %p129, %p130
    %p132 = scmp.ne.s32.totalorder %s123, %s124
    %p133 = scmp.eq.s32.totalorder %s19, 0
    %p134 = por %p132, %p133
    %p135 = scmp.ne.s32.totalorder %s123, %s124
    %p136 = scmp.eq.s32.totalorder %s20, 1
    %p137 = por %p135, %p136
    %p139 = scmp.ne.s32.totalorder %s124, %s138
    %p140 = scmp.eq.s32.totalorder %s20, 0
    %p141 = por %p139, %p140
    %s143 = sadd.s32 %s142, 1
    %p146 = scmp.eq.s32.totalorder %s14, 1
    %p147 = scmp.ne.s32.totalorder %s142, %s144
    %p148 = scmp.eq.s32.totalorder %s14, 0
    %p149 = por %p147, %p148
    %p150 = scmp.ne.s32.totalorder %s142, %s144
    %p151 = scmp.eq.s32.totalorder %s19, 1
    %p152 = por %p150, %p151
    %p153 = scmp.ne.s32.totalorder %s144, %s145
    %p154 = scmp.eq.s32.totalorder %s19, 0
    %p155 = por %p153, %p154
    %p156 = scmp.ne.s32.totalorder %s144, %s145
    %p157 = scmp.eq.s32.totalorder %s20, 1
    %p158 = por %p156, %p157
    %p160 = scmp.ne.s32.totalorder %s145, %s159
    %p161 = scmp.eq.s32.totalorder %s20, 0
    %p162 = por %p160, %p161
    %s164 = sadd.s32 %s163, 1
    %p167 = scmp.eq.s32.totalorder %s14, 1
    %p168 = scmp.ne.s32.totalorder %s163, %s165
    %p169 = scmp.eq.s32.totalorder %s14, 0
    %p170 = por %p168, %p169
    %p171 = scmp.ne.s32.totalorder %s163, %s165
    %p172 = scmp.eq.s32.totalorder %s19, 1
    %p173 = por %p171, %p172
    %p174 = scmp.ne.s32.totalorder %s165, %s166
    %p175 = scmp.eq.s32.totalorder %s19, 0
    %p176 = por %p174, %p175
    %p177 = scmp.ne.s32.totalorder %s165, %s166
    %p178 = scmp.eq.s32.totalorder %s20, 1
    %p179 = por %p177, %p178
    %p181 = scmp.ne.s32.totalorder %s166, %s180
    %p182 = scmp.eq.s32.totalorder %s20, 0
    %p183 = por %p181, %p182
    %s185 = sadd.s32 %s184, 1
    %p188 = scmp.eq.s32.totalorder %s14, 1
    %p189 = scmp.ne.s32.totalorder %s184, %s186
    %p190 = scmp.eq.s32.totalorder %s14, 0
    %p191 = por %p189, %p190
    %p192 = scmp.ne.s32.totalorder %s184, %s186
    %p193 = scmp.eq.s32.totalorder %s19, 1
    %p194 = por %p192, %p193
    %p195 = scmp.ne.s32.totalorder %s186, %s187
    %p196 = scmp.eq.s32.totalorder %s19, 0
    %p197 = por %p195, %p196
    %p198 = scmp.ne.s32.totalorder %s186, %s187
    %p199 = scmp.eq.s32.totalorder %s20, 1
    %p200 = por %p198, %p199
    %p202 = scmp.ne.s32.totalorder %s187, %s201
    %p203 = scmp.eq.s32.totalorder %s20, 0
    %p204 = por %p202, %p203
    %s205 = ssub.s32 %s14, %s21
    %p206 = scmp.eq.s32.totalorder %s205, 0
    %s208 = sadd.s32 %s207, 1
    %s209 = scalar_select %p206, %s207, %s208
    %p212 = pneg %p206
    %p213 = scmp.eq.s32.totalorder %s14, 1
    %p214 = por %p212, %p213
    %p215 = scmp.ne.s32.totalorder %s207, %s210
    %p216 = scmp.eq.s32.totalorder %s14, 0
    %p217 = por %p215, %p216
    %p218 = scmp.ne.s32.totalorder %s207, %s210
    %p219 = scmp.eq.s32.totalorder %s19, 1
    %p220 = por %p218, %p219
    %p221 = scmp.ne.s32.totalorder %s210, %s211
    %p222 = scmp.eq.s32.totalorder %s19, 0
    %p223 = por %p221, %p222
    %p224 = scmp.ne.s32.totalorder %s210, %s211
    %p225 = scmp.eq.s32.totalorder %s20, 1
    %p226 = por %p224, %p225
    %p228 = scmp.ne.s32.totalorder %s211, %s227
    %p229 = scmp.eq.s32.totalorder %s20, 0
    %p230 = por %p228, %p229
    %p231 = scmp.le.s32.totalorder 1, %s14
    %p232 = scmp.lt.s32.totalorder %s14, 3
    %p233 = pnand %p231, %p232
    %p234 = pneg %p233
    // Predicated region
    $region9: #{garan_attention_forward.1} parent=5 // pred_check
      _
    $region10: #{garan_attention_forward.1} parent=5 // pred_check_branch
      %236 = sbr.rel (%p233) target = $region12
    $region11: #{garan_attention_forward.1} parent=5 // pred_region
      %s237 = ssub.s32 %s14, 1
      // Predicated region
      $region13: #{garan_attention_forward.1} parent=11 // pred_check
        %p238 = pneg %p113
      $region14: #{garan_attention_forward.1} parent=11 // pred_check_branch
        %240 = sbr.rel (%p238) target = $region16
      $region15: #{garan_attention_forward.1} parent=11 // pred_region
        _
      $region16: #{garan_attention_forward.1} parent=11 // pred_fallthru
        _
      // Predicated region
      $region17: #{garan_attention_forward.1} parent=11 // pred_check
        %p241 = pneg %p134
      $region18: #{garan_attention_forward.1} parent=11 // pred_check_branch
        %243 = sbr.rel (%p241) target = $region20
      $region19: #{garan_attention_forward.1} parent=11 // pred_region
        _
      $region20: #{garan_attention_forward.1} parent=11 // pred_fallthru
        _
      // Predicated region
      $region21: #{garan_attention_forward.1} parent=11 // pred_check
        %p244 = pneg %p155
      $region22: #{garan_attention_forward.1} parent=11 // pred_check_branch
        %246 = sbr.rel (%p244) target = $region24
      $region23: #{garan_attention_forward.1} parent=11 // pred_region
        _
      $region24: #{garan_attention_forward.1} parent=11 // pred_fallthru
        _
      // Predicated region
      $region25: #{garan_attention_forward.1} parent=11 // pred_check
        %p247 = pneg %p176
      $region26: #{garan_attention_forward.1} parent=11 // pred_check_branch
        %249 = sbr.rel (%p247) target = $region28
      $region27: #{garan_attention_forward.1} parent=11 // pred_region
        _
      $region28: #{garan_attention_forward.1} parent=11 // pred_fallthru
        _
      // Predicated region
      $region29: #{garan_attention_forward.1} parent=11 // pred_check
        %p250 = pneg %p197
      $region30: #{garan_attention_forward.1} parent=11 // pred_check_branch
        %252 = sbr.rel (%p250) target = $region32
      $region31: #{garan_attention_forward.1} parent=11 // pred_region
        _
      $region32: #{garan_attention_forward.1} parent=11 // pred_fallthru
        _
    $region12: #{garan_attention_forward.1} parent=5 // pred_fallthru
      _
    %p253 = scmp.lt.s32.totalorder %s14, 2
    // Predicated region
    $region33: #{garan_attention_forward.1} parent=5 // pred_check
      %p254 = pneg %p253
    $region34: #{garan_attention_forward.1} parent=5 // pred_check_branch
      %256 = sbr.rel (%p254) target = $region36
    $region35: #{garan_attention_forward.1} parent=5 // pred_region
      // Predicated region
      $region37: #{garan_attention_forward.1} parent=35 // pred_check
        %p257 = pneg %p34
      $region38: #{garan_attention_forward.1} parent=35 // pred_check_branch
        %259 = sbr.rel (%p257) target = $region40
      $region39: #{garan_attention_forward.1} parent=35 // pred_region
        %p260 = scmp.lt.s32.totalorder %s14, 1
        %s261 = scalar_select %p260, %s14, 1
        %s262 = smul.addr %s261, 8
        %s263 = smul.addr %s262, 8
        %s264 = scalar_lea.vmem %s0, %s263
      $region40: #{garan_attention_forward.1} parent=35 // pred_fallthru
        _
      // Predicated region
      $region41: #{garan_attention_forward.1} parent=35 // pred_check
        %p265 = pneg %p60
      $region42: #{garan_attention_forward.1} parent=35 // pred_check_branch
        %267 = sbr.rel (%p265) target = $region44
      $region43: #{garan_attention_forward.1} parent=35 // pred_region
        %p268 = scmp.lt.s32.totalorder %s14, 1
        %s269 = scalar_select %p268, %s14, 1
        %s270 = smul.addr %s269, 2
        %s271 = scalar_lea.vmem %s1, %s270
      $region44: #{garan_attention_forward.1} parent=35 // pred_fallthru
        _
      // Predicated region
      $region45: #{garan_attention_forward.1} parent=35 // pred_check
        %p272 = pneg %p86
      $region46: #{garan_attention_forward.1} parent=35 // pred_check_branch
        %274 = sbr.rel (%p272) target = $region48
      $region47: #{garan_attention_forward.1} parent=35 // pred_region
        %p275 = scmp.lt.s32.totalorder %s14, 1
        %s276 = scalar_select %p275, %s14, 1
        %s277 = scalar_lea.vmem %s2, %s276
      $region48: #{garan_attention_forward.1} parent=35 // pred_fallthru
        _
    $region36: #{garan_attention_forward.1} parent=5 // pred_fallthru
      _
    %p278 = scmp.le.s32.totalorder 1, %s14
    %p279 = scmp.lt.s32.totalorder %s14, 3
    %p280 = pnand %p278, %p279
    %p281 = pneg %p280
    // Predicated region
    $region49: #{garan_attention_forward.1} parent=5 // pred_check
      _
    $region50: #{garan_attention_forward.1} parent=5 // pred_check_branch
      %283 = sbr.rel (%p280) target = $region52
    $region51: #{garan_attention_forward.1} parent=5 // pred_region
      %s284 = ssub.s32 %s14, 1
      %p285 = scmp.lt.s32.totalorder %s19, 1
      %s286 = scalar_select %p285, %s19, 1
      %s287 = smul.addr %s286, 8
      %s288 = smul.addr %s287, 8
      %s289 = scalar_lea.vmem %s0, %s288
      %p290 = pneg %p40
      %p291 = pneg %p37
      %p292 = scmp.lt.s32.totalorder %s19, 1
      %s293 = scalar_select %p292, %s19, 1
      %s294 = smul.addr %s293, 2
      %s295 = scalar_lea.vmem %s1, %s294
      %p296 = pneg %p66
      %p297 = pneg %p63
      %p298 = scmp.lt.s32.totalorder %s19, 1
      %s299 = scalar_select %p298, %s19, 1
      %s300 = scalar_lea.vmem %s2, %s299
      %p301 = pneg %p92
      %p302 = pneg %p89
      %p303 = pneg %p113
      %p304 = pneg %p110
      %p305 = pneg %p134
      %p306 = pneg %p131
      %p307 = pneg %p155
      %p308 = pneg %p152
      %p309 = pneg %p176
      %p310 = pneg %p173
      %p311 = pneg %p197
      %p312 = pneg %p194
      %p313 = pneg %p223
      %p314 = pneg %p220
      %p315 = scmp.lt.s32.totalorder %s19, 1
      %s316 = scalar_select %p315, %s19, 1
      %s317 = smul.addr %s316, 8
      %s318 = smul.addr %s317, 8
      %s319 = scalar_lea.vmem %s8, %s318
      %p320 = scmp.lt.s32.totalorder %s19, 1
      %s321 = scalar_select %p320, %s19, 1
      %s322 = smul.addr %s321, 8
      %s323 = smul.addr %s322, 8
      %s324 = scalar_lea.vmem %s0, %s323
      %p325 = scmp.lt.s32.totalorder %s19, 1
      %s326 = scalar_select %p325, %s19, 1
      %s327 = smul.addr %s326, 2
      %s328 = scalar_lea.vmem %s1, %s327
      %p329 = scmp.lt.s32.totalorder %s19, 1
      %s330 = scalar_select %p329, %s19, 1
      %s331 = scalar_lea.vmem %s2, %s330
      %p332 = scmp.lt.s32.totalorder %s19, 1
      %s333 = scalar_select %p332, %s19, 1
      %s334 = smul.addr %s333, 8
      %s335 = smul.addr %s334, 8
      %s336 = scalar_lea.vmem %s8, %s335
      %v337 = vld [vmem:[%s324] sm:$0xff]
      %v338 = vld [vmem:[%s324 + $0x8] sm:$0xff]
      %v339 = vld [vmem:[%s324 + $0x10] sm:$0xff]
      %v340 = vld [vmem:[%s324 + $0x18] sm:$0xff]
      %v341 = vld [vmem:[%s324 + $0x20] sm:$0xff]
      %v342 = vld [vmem:[%s324 + $0x28] sm:$0xff]
      %v343 = vld [vmem:[%s324 + $0x30] sm:$0xff]
      %v344 = vld [vmem:[%s324 + $0x38] sm:$0xff]
      %v345 = vld [vmem:[%s328] sm:$0x3]
      %vm346 = vcmask 261120
      %v348 = vsel %vm346, %v345, 0
      %350 = vmatprep.subr.mxu0 0.0
      %351 = vmatpush1.msra.mxu0 0.0
      %352 = vmatprep.subr.mxu0 0.0
      %353 = vmatpush1.msra.mxu0 0.0
      %354 = vmatprep.subr.mxu0 0.0
      %355 = vmatpush1.msra.mxu0 0.0
      %356 = vmatprep.subr.mxu0 0.0
      %357 = vmatpush1.msra.mxu0 0.0
      %358 = vmatprep.subr.mxu0 0.0
      %359 = vmatpush1.msra.mxu0 0.0
      %360 = vmatprep.subr.mxu0 0.0
      %361 = vmatpush1.msra.mxu0 0.0
      %362 = vmatprep.subr.mxu0 0.0
      %363 = vmatpush1.msra.mxu0 0.0
      %364 = vmatprep.subr.mxu0 0.0
      %365 = vmatpush1.msra.mxu0 0.0
      %366 = vmatprep.subr.mxu0 0.0
      %367 = vmatpush1.msra.mxu0 0.0
      %368 = vmatprep.subr.mxu0 0.0
      %369 = vmatpush1.msra.mxu0 0.0
      %370 = vmatprep.subr.mxu0 0.0
      %371 = vmatpush1.msra.mxu0 0.0
      %372 = vmatprep.subr.mxu0 0.0
      %373 = vmatpush1.msra.mxu0 0.0
      %374 = vmatprep.subr.mxu0 %v344
      %375 = vmatpush1.msra.mxu0 %v343
      %376 = vmatprep.subr.mxu0 %v342
      %377 = vmatpush1.msra.mxu0 %v341
      %378 = vmatprep.subr.mxu0 %v340
      %379 = vmatpush1.msra.mxu0 %v339
      %380 = vmatprep.subr.mxu0 %v338
      %381 = vmatpush1.msra.mxu0 %v337
      %382 = vmatprep.subr.mxu0 0.0
      %383 = vmatpush2.msra.mxu0 0.0
      %384 = vmatprep.subr.mxu0 0.0
      %385 = vmatpush2.msra.mxu0 0.0
      %386 = vmatprep.subr.mxu0 0.0
      %387 = vmatpush2.msra.mxu0 0.0
      %388 = vmatprep.subr.mxu0 0.0
      %389 = vmatpush2.msra.mxu0 0.0
      %390 = vmatprep.subr.mxu0 0.0
      %391 = vmatpush2.msra.mxu0 0.0
      %392 = vmatprep.subr.mxu0 0.0
      %393 = vmatpush2.msra.mxu0 0.0
      %394 = vmatprep.subr.mxu0 0.0
      %395 = vmatpush2.msra.mxu0 0.0
      %396 = vmatprep.subr.mxu0 0.0
      %397 = vmatpush2.msra.mxu0 0.0
      %398 = vmatprep.subr.mxu0 0.0
      %399 = vmatpush2.msra.mxu0 0.0
      %400 = vmatprep.subr.mxu0 0.0
      %401 = vmatpush2.msra.mxu0 0.0
      %402 = vmatprep.subr.mxu0 0.0
      %403 = vmatpush2.msra.mxu0 0.0
      %404 = vmatprep.subr.mxu0 0.0
      %405 = vmatpush2.msra.mxu0 0.0
      %406 = vmatprep.subr.mxu0 0.0
      %407 = vmatpush2.msra.mxu0 0.0
      %408 = vmatprep.subr.mxu0 0.0
      %409 = vmatpush2.msra.mxu0 0.0
      %410 = vmatprep.subr.mxu0 0.0
      %411 = vmatpush2.msra.mxu0 0.0
      %412 = vmatprep.subr.mxu0 0.0
      %413 = vmatpush2.msra.mxu0 0.0
      %414 = vmatprep.mubr.f32.mxu0 0.0
      %415 = vmatmul.mubr.f32.gmra.mxu0 %v348
      %v416 = vpop.f32.mrf.mxu0
      %v417 = vadd.f32 0.0, %v416
      %v418 = vpop.f32.mrf.mxu0
      %v419 = vadd.f32 0.0, %v418
      %420 = vdwg.mxu0
      %vm421 = vcmask 1040384
      %v422 = vsel %vm421, %v417, -inf
      %v423 = vsel %vm421, %v419, -inf
      %v424 = vmax.f32 %v422, %v423
      %425 = vmax.xlane.f32.xlu0 %v424
      %v426 = vpop.xlane.xlu0 %425
      %v427 = vsub.f32 %v417, %v426
      %v428 = vsub.f32 %v419, %v426
      %v429 = vmul.f32 %v427, 1.442695
      %v430 = vpow.pop %v429
      %v431 = vmul.f32 %v428, 1.442695
      %v432 = vpow.pop %v431
      %v433 = vsel %vm421, %v430, 0.0
      %v434 = vsel %vm421, %v432, 0.0
      %v435 = vadd.f32 %v433, %v434
      %436 = vadd.xlane.f32.xlu0 %v435
      %v437 = vpop.xlane.xlu0 %436
      %v438 = vlaneseq
      %v439 = vshrl.u32 %v438, 7
      %v440 = vsub.s32 0, %v439
      %v441 = vrot.slane %v430, %v440
      %v442 = vlaneseq
      %v443 = vshrl.u32 %v442, 7
      %v444 = vsub.s32 0, %v443
      %v445 = vrot.slane %v432, %v444
      %v446 = vmul.f32 %v337, %v441
      %v447 = vmul.f32 %v338, %v445
      %v448 = vmul.f32 %v339, %v441
      %v449 = vmul.f32 %v340, %v445
      %v450 = vmul.f32 %v341, %v441
      %v451 = vmul.f32 %v342, %v445
      %v452 = vmul.f32 %v343, %v441
      %v453 = vmul.f32 %v344, %v445
      %v454 = vadd.f32 %v446, %v447
      %455 = vadd.xlane.f32.xlu0 %v454
      %v456 = vpop.xlane.xlu0 %455
      %v457 = vadd.f32 %v448, %v449
      %458 = vadd.xlane.f32.xlu0 %v457
      %v459 = vpop.xlane.xlu0 %458
      %v460 = vadd.f32 %v450, %v451
      %461 = vadd.xlane.f32.xlu0 %v460
      %v462 = vpop.xlane.xlu0 %461
      %v463 = vadd.f32 %v452, %v453
      %464 = vadd.xlane.f32.xlu0 %v463
      %v465 = vpop.xlane.xlu0 %464
      %v466 = vlaneseq
      %v467 = vshrl.u32 %v466, 7
      %v468 = vsub.s32 0, %v467
      %v469 = vrot.slane %v437, %v468
      %v470 = vrcp.pop %v469
      %v471 = vmul.f32 %v456, %v470
      %v472 = vmul.f32 %v459, %v470
      %v473 = vmul.f32 %v462, %v470
      %v474 = vmul.f32 %v465, %v470
      %v475 = vld [vmem:[%s3] sm:$0xff]
      %v476 = vld [vmem:[%s3 + $0x8] sm:$0xff]
      %v477 = vld [vmem:[%s3 + $0x10] sm:$0xff]
      %v478 = vld [vmem:[%s3 + $0x18] sm:$0xff]
      %v479 = vld [vmem:[%s4] sm:$0xff]
      %v480 = vld [vmem:[%s4 + $0x8] sm:$0xff]
      %v481 = vld [vmem:[%s4 + $0x10] sm:$0xff]
      %v482 = vld [vmem:[%s4 + $0x18] sm:$0xff]
      %v484 = vsel %vm346, %v475, 0
      %v487 = vsel %vm346, %v476, 0
      %v490 = vsel %vm346, %v477, 0
      %v493 = vsel %vm346, %v478, 0
      %495 = vmatprep.subr.mxu0 0.0
      %496 = vmatpush1.msra.mxu0 0.0
      %497 = vmatprep.subr.mxu0 0.0
      %498 = vmatpush1.msra.mxu0 0.0
      %499 = vmatprep.subr.mxu0 0.0
      %500 = vmatpush1.msra.mxu0 0.0
      %501 = vmatprep.subr.mxu0 0.0
      %502 = vmatpush1.msra.mxu0 0.0
      %503 = vmatprep.subr.mxu0 0.0
      %504 = vmatpush1.msra.mxu0 0.0
      %505 = vmatprep.subr.mxu0 0.0
      %506 = vmatpush1.msra.mxu0 0.0
      %507 = vmatprep.subr.mxu0 0.0
      %508 = vmatpush1.msra.mxu0 0.0
      %509 = vmatprep.subr.mxu0 0.0
      %510 = vmatpush1.msra.mxu0 0.0
      %511 = vmatprep.subr.mxu0 0.0
      %512 = vmatpush1.msra.mxu0 0.0
      %513 = vmatprep.subr.mxu0 0.0
      %514 = vmatpush1.msra.mxu0 0.0
      %515 = vmatprep.subr.mxu0 0.0
      %516 = vmatpush1.msra.mxu0 0.0
      %517 = vmatprep.subr.mxu0 0.0
      %518 = vmatpush1.msra.mxu0 0.0
      %519 = vmatprep.subr.mxu0 0.0
      %520 = vmatpush1.msra.mxu0 %v474
      %521 = vmatprep.subr.mxu0 0.0
      %522 = vmatpush1.msra.mxu0 %v473
      %523 = vmatprep.subr.mxu0 0.0
      %524 = vmatpush1.msra.mxu0 %v472
      %525 = vmatprep.subr.mxu0 0.0
      %526 = vmatpush1.msra.mxu0 %v471
      %527 = vmatprep.subr.mxu0 0.0
      %528 = vmatpush2.msra.mxu0 0.0
      %529 = vmatprep.subr.mxu0 0.0
      %530 = vmatpush2.msra.mxu0 0.0
      %531 = vmatprep.subr.mxu0 0.0
      %532 = vmatpush2.msra.mxu0 0.0
      %533 = vmatprep.subr.mxu0 0.0
      %534 = vmatpush2.msra.mxu0 0.0
      %535 = vmatprep.subr.mxu0 0.0
      %536 = vmatpush2.msra.mxu0 0.0
      %537 = vmatprep.subr.mxu0 0.0
      %538 = vmatpush2.msra.mxu0 0.0
      %539 = vmatprep.subr.mxu0 0.0
      %540 = vmatpush2.msra.mxu0 0.0
      %541 = vmatprep.subr.mxu0 0.0
      %542 = vmatpush2.msra.mxu0 0.0
      %543 = vmatprep.subr.mxu0 0.0
      %544 = vmatpush2.msra.mxu0 0.0
      %545 = vmatprep.subr.mxu0 0.0
      %546 = vmatpush2.msra.mxu0 0.0
      %547 = vmatprep.subr.mxu0 0.0
      %548 = vmatpush2.msra.mxu0 0.0
      %549 = vmatprep.subr.mxu0 0.0
      %550 = vmatpush2.msra.mxu0 0.0
      %551 = vmatprep.subr.mxu0 0.0
      %552 = vmatpush2.msra.mxu0 0.0
      %553 = vmatprep.subr.mxu0 0.0
      %554 = vmatpush2.msra.mxu0 0.0
      %555 = vmatprep.subr.mxu0 0.0
      %556 = vmatpush2.msra.mxu0 0.0
      %557 = vmatprep.subr.mxu0 0.0
      %558 = vmatpush2.msra.mxu0 0.0
      %559 = vmatprep.mubr.f32.mxu0 0.0
      %560 = vmatmul.mubr.f32.gmra.mxu0 %v484
      %v561 = vpop.f32.mrf.mxu0
      %v562 = vadd.f32 %v479, %v561
      %v563 = vpop.f32.mrf.mxu0
      %564 = vmatprep.mubr.f32.mxu0 0.0
      %565 = vmatmul.mubr.f32.gmra.mxu0 %v487
      %v566 = vpop.f32.mrf.mxu0
      %v567 = vadd.f32 %v480, %v566
      %v568 = vpop.f32.mrf.mxu0
      %569 = vmatprep.mubr.f32.mxu0 0.0
      %570 = vmatmul.mubr.f32.gmra.mxu0 %v490
      %v571 = vpop.f32.mrf.mxu0
      %v572 = vadd.f32 %v481, %v571
      %v573 = vpop.f32.mrf.mxu0
      %574 = vmatprep.mubr.f32.mxu0 0.0
      %575 = vmatmul.mubr.f32.gmra.mxu0 %v493
      %v576 = vpop.f32.mrf.mxu0
      %v577 = vadd.f32 %v482, %v576
      %v578 = vpop.f32.mrf.mxu0
      %579 = vdwg.mxu0
      %v580 = vld [vmem:[%s5] sm:$0xff]
      %v581 = vld [vmem:[%s5 + $0x8] sm:$0xff]
      %v582 = vld [vmem:[%s5 + $0x10] sm:$0xff]
      %v583 = vld [vmem:[%s5 + $0x18] sm:$0xff]
      %v584 = vld [vmem:[%s5 + $0x20] sm:$0xff]
      %v585 = vld [vmem:[%s5 + $0x28] sm:$0xff]
      %v586 = vld [vmem:[%s5 + $0x30] sm:$0xff]
      %v587 = vld [vmem:[%s5 + $0x38] sm:$0xff]
      %v588 = vld [vmem:[%s5 + $0x40] sm:$0xff]
      %v589 = vld [vmem:[%s5 + $0x48] sm:$0xff]
      %v590 = vld [vmem:[%s5 + $0x50] sm:$0xff]
      %v591 = vld [vmem:[%s5 + $0x58] sm:$0xff]
      %v592 = vld [vmem:[%s5 + $0x60] sm:$0xff]
      %v593 = vld [vmem:[%s5 + $0x68] sm:$0xff]
      %v594 = vld [vmem:[%s5 + $0x70] sm:$0xff]
      %v595 = vld [vmem:[%s5 + $0x78] sm:$0xff]
      %v596 = vld [vmem:[%s5 + $0x80] sm:$0xff]
      %v597 = vld [vmem:[%s5 + $0x88] sm:$0xff]
      %v598 = vld [vmem:[%s5 + $0x90] sm:$0xff]
      %v599 = vld [vmem:[%s5 + $0x98] sm:$0xff]
      %v600 = vld [vmem:[%s5 + $0xa0] sm:$0xff]
      %v601 = vld [vmem:[%s5 + $0xa8] sm:$0xff]
      %v602 = vld [vmem:[%s5 + $0xb0] sm:$0xff]
      %v603 = vld [vmem:[%s5 + $0xb8] sm:$0xff]
      %v604 = vld [vmem:[%s5 + $0xc0] sm:$0xff]
      %v605 = vld [vmem:[%s5 + $0xc8] sm:$0xff]
      %v606 = vld [vmem:[%s5 + $0xd0] sm:$0xff]
      %v607 = vld [vmem:[%s5 + $0xd8] sm:$0xff]
      %v608 = vld [vmem:[%s5 + $0xe0] sm:$0xff]
      %v609 = vld [vmem:[%s5 + $0xe8] sm:$0xff]
      %v610 = vld [vmem:[%s5 + $0xf0] sm:$0xff]
      %v611 = vld [vmem:[%s5 + $0xf8] sm:$0xff]
      %v612 = vld [vmem:[%s5 + $0x100] sm:$0xff]
      %v613 = vld [vmem:[%s5 + $0x108] sm:$0xff]
      %v614 = vld [vmem:[%s5 + $0x110] sm:$0xff]
      %v615 = vld [vmem:[%s5 + $0x118] sm:$0xff]
      %v616 = vld [vmem:[%s5 + $0x120] sm:$0xff]
      %v617 = vld [vmem:[%s5 + $0x128] sm:$0xff]
      %v618 = vld [vmem:[%s5 + $0x130] sm:$0xff]
      %v619 = vld [vmem:[%s5 + $0x138] sm:$0xff]
      %v620 = vld [vmem:[%s5 + $0x140] sm:$0xff]
      %v621 = vld [vmem:[%s5 + $0x148] sm:$0xff]
      %v622 = vld [vmem:[%s5 + $0x150] sm:$0xff]
      %v623 = vld [vmem:[%s5 + $0x158] sm:$0xff]
      %v624 = vld [vmem:[%s5 + $0x160] sm:$0xff]
      %v625 = vld [vmem:[%s5 + $0x168] sm:$0xff]
      %v626 = vld [vmem:[%s5 + $0x170] sm:$0xff]
      %v627 = vld [vmem:[%s5 + $0x178] sm:$0xff]
      %v628 = vld [vmem:[%s5 + $0x180] sm:$0xff]
      %v629 = vld [vmem:[%s5 + $0x188] sm:$0xff]
      %v630 = vld [vmem:[%s5 + $0x190] sm:$0xff]
      %v631 = vld [vmem:[%s5 + $0x198] sm:$0xff]
      %v632 = vld [vmem:[%s5 + $0x1a0] sm:$0xff]
      %v633 = vld [vmem:[%s5 + $0x1a8] sm:$0xff]
      %v634 = vld [vmem:[%s5 + $0x1b0] sm:$0xff]
      %v635 = vld [vmem:[%s5 + $0x1b8] sm:$0xff]
      %v636 = vld [vmem:[%s5 + $0x1c0] sm:$0xff]
      %v637 = vld [vmem:[%s5 + $0x1c8] sm:$0xff]
      %v638 = vld [vmem:[%s5 + $0x1d0] sm:$0xff]
      %v639 = vld [vmem:[%s5 + $0x1d8] sm:$0xff]
      %v640 = vld [vmem:[%s5 + $0x1e0] sm:$0xff]
      %v641 = vld [vmem:[%s5 + $0x1e8] sm:$0xff]
      %v642 = vld [vmem:[%s5 + $0x1f0] sm:$0xff]
      %v643 = vld [vmem:[%s5 + $0x1f8] sm:$0xff]
      %v644 = vld [vmem:[%s331] sm:$0x1]
      %646 = vset.pattern.permute.xlu0 0
      %647 = vperm.xlu0 %646, %v644
      %v648 = vpop.permute.xlu0 %647
      %v650 = vlaneseq
      %v651 = vshrl.u32 %v650, 7
      %v652 = vsub.s32 0, %v651
      %v653 = vrot.slane %v648, %v652
      %v656 = vrot.slane %v417, 1
      %v657 = vrot.slane %v419, 1
      %660 = vmatprep.subr.mxu0 %v611
      %661 = vmatpush1.msra.mxu0 %v610
      %662 = vmatprep.subr.mxu0 %v609
      %663 = vmatpush1.msra.mxu0 %v608
      %664 = vmatprep.subr.mxu0 %v607
      %665 = vmatpush1.msra.mxu0 %v606
      %666 = vmatprep.subr.mxu0 %v605
      %667 = vmatpush1.msra.mxu0 %v604
      %668 = vmatprep.subr.mxu0 %v603
      %669 = vmatpush1.msra.mxu0 %v602
      %670 = vmatprep.subr.mxu0 %v601
      %671 = vmatpush1.msra.mxu0 %v600
      %672 = vmatprep.subr.mxu0 %v599
      %673 = vmatpush1.msra.mxu0 %v598
      %674 = vmatprep.subr.mxu0 %v597
      %675 = vmatpush1.msra.mxu0 %v596
      %676 = vmatprep.subr.mxu0 %v595
      %677 = vmatpush1.msra.mxu0 %v594
      %678 = vmatprep.subr.mxu0 %v593
      %679 = vmatpush1.msra.mxu0 %v592
      %680 = vmatprep.subr.mxu0 %v591
      %681 = vmatpush1.msra.mxu0 %v590
      %682 = vmatprep.subr.mxu0 %v589
      %683 = vmatpush1.msra.mxu0 %v588
      %684 = vmatprep.subr.mxu0 %v587
      %685 = vmatpush1.msra.mxu0 %v586
      %686 = vmatprep.subr.mxu0 %v585
      %687 = vmatpush1.msra.mxu0 %v584
      %688 = vmatprep.subr.mxu0 %v583
      %689 = vmatpush1.msra.mxu0 %v582
      %690 = vmatprep.subr.mxu0 %v581
      %691 = vmatpush1.msra.mxu0 %v580
      %692 = vmatprep.subr.mxu0 %v643
      %693 = vmatpush2.msra.mxu0 %v642
      %694 = vmatprep.subr.mxu0 %v641
      %695 = vmatpush2.msra.mxu0 %v640
      %696 = vmatprep.subr.mxu0 %v639
      %697 = vmatpush2.msra.mxu0 %v638
      %698 = vmatprep.subr.mxu0 %v637
      %699 = vmatpush2.msra.mxu0 %v636
      %700 = vmatprep.subr.mxu0 %v635
      %701 = vmatpush2.msra.mxu0 %v634
      %702 = vmatprep.subr.mxu0 %v633
      %703 = vmatpush2.msra.mxu0 %v632
      %704 = vmatprep.subr.mxu0 %v631
      %705 = vmatpush2.msra.mxu0 %v630
      %706 = vmatprep.subr.mxu0 %v629
      %707 = vmatpush2.msra.mxu0 %v628
      %708 = vmatprep.subr.mxu0 %v627
      %709 = vmatpush2.msra.mxu0 %v626
      %710 = vmatprep.subr.mxu0 %v625
      %711 = vmatpush2.msra.mxu0 %v624
      %712 = vmatprep.subr.mxu0 %v623
      %713 = vmatpush2.msra.mxu0 %v622
      %714 = vmatprep.subr.mxu0 %v621
      %715 = vmatpush2.msra.mxu0 %v620
      %716 = vmatprep.subr.mxu0 %v619
      %717 = vmatpush2.msra.mxu0 %v618
      %718 = vmatprep.subr.mxu0 %v617
      %719 = vmatpush2.msra.mxu0 %v616
      %720 = vmatprep.subr.mxu0 %v615
      %721 = vmatpush2.msra.mxu0 %v614
      %722 = vmatprep.subr.mxu0 %v613
      %723 = vmatpush2.msra.mxu0 %v612
      %724 = vmatprep.mubr.f32.mxu0 %v657
      %725 = vmatmul.mubr.f32.gmra.mxu0 %v656
      %v726 = vpop.f32.mrf.mxu0
      %v727 = vadd.f32 %v653, %v726
      %v728 = vpop.f32.mrf.mxu0
      %v729 = vadd.f32 %v653, %v728
      %730 = vdwg.mxu0
      %v731 = vxor.u32 %v727, 2147483648
      %v732 = vxor.u32 %v729, 2147483648
      %v733 = vmul.f32 %v731, 1.442695
      %v734 = vpow.pop %v733
      %v735 = vmul.f32 %v732, 1.442695
      %v736 = vpow.pop %v735
      %v737 = vadd.f32 %v734, 1.0
      %v738 = vadd.f32 %v736, 1.0
      %v739 = vrcp.pop %v737
      %v740 = vmul.f32 1.0, %v739
      %v741 = vrcp.pop %v738
      %v742 = vmul.f32 1.0, %v741
      %744 = vset.pattern.permute.xlu0 0
      %745 = vperm.xlu0 %744, %v562
      %v746 = vpop.permute.xlu0 %745
      %749 = vset.pattern.permute.xlu0 0
      %750 = vperm.xlu0 %749, %v567
      %v751 = vpop.permute.xlu0 %750
      %754 = vset.pattern.permute.xlu0 0
      %755 = vperm.xlu0 %754, %v572
      %v756 = vpop.permute.xlu0 %755
      %759 = vset.pattern.permute.xlu0 0
      %760 = vperm.xlu0 %759, %v577
      %v761 = vpop.permute.xlu0 %760
      %v763 = vlaneseq
      %v764 = vshrl.u32 %v763, 7
      %v765 = vsub.s32 0, %v764
      %v766 = vrot.slane %v740, %v765
      %v767 = vlaneseq
      %v768 = vshrl.u32 %v767, 7
      %v769 = vsub.s32 0, %v768
      %v770 = vrot.slane %v742, %v769
      %v771 = vmul.f32 %v746, %v766
      %v772 = vmul.f32 %v746, %v770
      %v773 = vmul.f32 %v751, %v766
      %v774 = vmul.f32 %v751, %v770
      %v775 = vmul.f32 %v756, %v766
      %v776 = vmul.f32 %v756, %v770
      %v777 = vmul.f32 %v761, %v766
      %v778 = vmul.f32 %v761, %v770
      %v779 = vadd.f32 %v771, %v337
      %v780 = vadd.f32 %v772, %v338
      %v781 = vadd.f32 %v773, %v339
      %v782 = vadd.f32 %v774, %v340
      %v783 = vadd.f32 %v775, %v341
      %v784 = vadd.f32 %v776, %v342
      %v785 = vadd.f32 %v777, %v343
      %v786 = vadd.f32 %v778, %v344
      %v787 = vld [vmem:[%s6] sm:$0xff]
      %v788 = vld [vmem:[%s6 + $0x8] sm:$0xff]
      %v789 = vld [vmem:[%s6 + $0x10] sm:$0xff]
      %v790 = vld [vmem:[%s6 + $0x18] sm:$0xff]
      %792 = vset.pattern.permute.xlu0 0
      %793 = vperm.xlu0 %792, %v787
      %v794 = vpop.permute.xlu0 %793
      %797 = vset.pattern.permute.xlu0 0
      %798 = vperm.xlu0 %797, %v788
      %v799 = vpop.permute.xlu0 %798
      %802 = vset.pattern.permute.xlu0 0
      %803 = vperm.xlu0 %802, %v789
      %v804 = vpop.permute.xlu0 %803
      %807 = vset.pattern.permute.xlu0 0
      %808 = vperm.xlu0 %807, %v790
      %v809 = vpop.permute.xlu0 %808
      %v811 = vmul.f32 %v779, %v794
      %v812 = vmul.f32 %v780, %v794
      %v813 = vmul.f32 %v781, %v799
      %v814 = vmul.f32 %v782, %v799
      %v815 = vmul.f32 %v783, %v804
      %v816 = vmul.f32 %v784, %v804
      %v817 = vmul.f32 %v785, %v809
      %v818 = vmul.f32 %v786, %v809
      %v819 = vld [vmem:[%s7] sm:$0xff]
      %v820 = vld [vmem:[%s7 + $0x8] sm:$0xff]
      %v821 = vld [vmem:[%s7 + $0x10] sm:$0xff]
      %v822 = vld [vmem:[%s7 + $0x18] sm:$0xff]
      %824 = vset.pattern.permute.xlu0 0
      %825 = vperm.xlu0 %824, %v819
      %v826 = vpop.permute.xlu0 %825
      %829 = vset.pattern.permute.xlu0 0
      %830 = vperm.xlu0 %829, %v820
      %v831 = vpop.permute.xlu0 %830
      %834 = vset.pattern.permute.xlu0 0
      %835 = vperm.xlu0 %834, %v821
      %v836 = vpop.permute.xlu0 %835
      %839 = vset.pattern.permute.xlu0 0
      %840 = vperm.xlu0 %839, %v822
      %v841 = vpop.permute.xlu0 %840
      %v843 = vadd.f32 %v811, %v826
      %v844 = vadd.f32 %v812, %v826
      %v845 = vadd.f32 %v813, %v831
      %v846 = vadd.f32 %v814, %v831
      %v847 = vadd.f32 %v815, %v836
      %v848 = vadd.f32 %v816, %v836
      %v849 = vadd.f32 %v817, %v841
      %v850 = vadd.f32 %v818, %v841
      %vm851 = vcmp.ge.f32.partialorder %v843, 0.0
      %vm852 = vcmp.ge.f32.partialorder %v844, 0.0
      %vm853 = vcmp.ge.f32.partialorder %v845, 0.0
      %vm854 = vcmp.ge.f32.partialorder %v846, 0.0
      %vm855 = vcmp.ge.f32.partialorder %v847, 0.0
      %vm856 = vcmp.ge.f32.partialorder %v848, 0.0
      %vm857 = vcmp.ge.f32.partialorder %v849, 0.0
      %vm858 = vcmp.ge.f32.partialorder %v850, 0.0
      %v859 = vmul.f32 %v843, 0.1
      %v860 = vmul.f32 %v844, 0.1
      %v861 = vmul.f32 %v845, 0.1
      %v862 = vmul.f32 %v846, 0.1
      %v863 = vmul.f32 %v847, 0.1
      %v864 = vmul.f32 %v848, 0.1
      %v865 = vmul.f32 %v849, 0.1
      %v866 = vmul.f32 %v850, 0.1
      %v867 = vsel %vm851, %v843, %v859
      %v868 = vsel %vm852, %v844, %v860
      %v869 = vsel %vm853, %v845, %v861
      %v870 = vsel %vm854, %v846, %v862
      %v871 = vsel %vm855, %v847, %v863
      %v872 = vsel %vm856, %v848, %v864
      %v873 = vsel %vm857, %v849, %v865
      %v874 = vsel %vm858, %v850, %v866
      %875 = vst [vmem:[%s336] sm:$0xff] %v867
      %876 = vst [vmem:[%s336 + $0x8] sm:$0xff] %v868
      %877 = vst [vmem:[%s336 + $0x10] sm:$0xff] %v869
      %878 = vst [vmem:[%s336 + $0x18] sm:$0xff] %v870
      %879 = vst [vmem:[%s336 + $0x20] sm:$0xff] %v871
      %880 = vst [vmem:[%s336 + $0x28] sm:$0xff] %v872
      %881 = vst [vmem:[%s336 + $0x30] sm:$0xff] %v873
      %882 = vst [vmem:[%s336 + $0x38] sm:$0xff] %v874
      %p883 = scmp.lt.s32.totalorder %s19, 1
      %s884 = scalar_select %p883, %s19, 1
      %s885 = smul.addr %s884, 8
      %s886 = smul.addr %s885, 8
      %s887 = scalar_lea.vmem %s8, %s886
      // Predicated region
      $region53: #{garan_attention_forward.1} parent=51 // pred_check
        %p888 = pneg %p220
      $region54: #{garan_attention_forward.1} parent=51 // pred_check_branch
        %890 = sbr.rel (%p888) target = $region56
      $region55: #{garan_attention_forward.1} parent=51 // pred_region
        _
      $region56: #{garan_attention_forward.1} parent=51 // pred_fallthru
        _
    $region52: #{garan_attention_forward.1} parent=5 // pred_fallthru
      _
    %p891 = scmp.le.s32.totalorder 2, %s14
    // Predicated region
    $region57: #{garan_attention_forward.1} parent=5 // pred_check
      %p892 = pneg %p891
    $region58: #{garan_attention_forward.1} parent=5 // pred_check_branch
      %894 = sbr.rel (%p892) target = $region60
    $region59: #{garan_attention_forward.1} parent=5 // pred_region
      %s895 = ssub.s32 %s14, 2
      // Predicated region
      $region61: #{garan_attention_forward.1} parent=59 // pred_check
        %p896 = pneg %p226
      $region62: #{garan_attention_forward.1} parent=59 // pred_check_branch
        %898 = sbr.rel (%p896) target = $region64
      $region63: #{garan_attention_forward.1} parent=59 // pred_region
        %p899 = scmp.lt.s32.totalorder %s20, 1
        %s900 = scalar_select %p899, %s20, 1
        %s901 = smul.addr %s900, 8
        %s902 = smul.addr %s901, 8
        %s903 = scalar_lea.vmem %s8, %s902
      $region64: #{garan_attention_forward.1} parent=59 // pred_fallthru
        _
    $region60: #{garan_attention_forward.1} parent=5 // pred_fallthru
      _
  $region6: #{garan_attention_forward.1} parent=0 // loop_footer
    %s18 = sadd.s32 1, %s14
  $region7: #{garan_attention_forward.1} parent=0 // loop_footer_branch
    %13 = sbr.rel target = $region3
  $region8: #{garan_attention_forward.1} parent=0 // loop_exit
    _

</llo_original>
